<compile_context>
chip_gen: v7x
topology: tpu7x:2x2x1
jax: 0.10.0
libtpu: 0.0.40
codegen_flags: <defaults>
</compile_context>

<pallas_src>
import numpy as np
import jax
import jax.numpy as jnp
from jax.experimental import pallas as pl
from jax.experimental.pallas import tpu as pltpu


def _blend_row_alpha_kernel(a_ref, xs_ref, xt_ref, o_ref):
    # a_ref : (tile_bt, 1) f32 per-row alpha (single lane-broadcast)
    # xs_ref / xt_ref / o_ref : (tile_bt, tile_sc) lane-dense tiles
    a = a_ref[...]
    xs = xs_ref[...].astype(jnp.float32)
    xt = xt_ref[...].astype(jnp.float32)
    o_ref[...] = (a * xs + (1.0 - a) * xt).astype(o_ref.dtype)


def _blend_scalar_alpha_kernel(a_ref, xs_ref, xt_ref, o_ref):
    # a_ref : (1, 1) f32 scalar alpha held in SMEM (no per-step VMEM stream)
    a = a_ref[0, 0]
    xs = xs_ref[...].astype(jnp.float32)
    xt = xt_ref[...].astype(jnp.float32)
    o_ref[...] = (a * xs + (1.0 - a) * xt).astype(o_ref.dtype)


def _choose_tiles(BT, SC, itemsize, target_bytes=4 << 20):
    """Pick (tile_bt, tile_sc) so each operand block is ~target_bytes and
    3 operands x 2 pipeline buffers stay far below v7x's 64 MiB VMEM."""
    # Lane tile: full extent if small, else a multiple of 128 such that 8 rows
    # of it are ~target_bytes.
    max_row_lanes = max(128, (target_bytes // (8 * itemsize) // 128) * 128)
    tile_sc = SC if SC <= max_row_lanes else max_row_lanes

    # Sublane tile: as many rows as fit the target (multiple of 8), or full extent.
    rows = max(1, target_bytes // max(tile_sc * itemsize, 1))
    tile_bt = BT if rows >= BT else max(8, (rows // 8) * 8)

    # Guarantee >= 2 grid steps when there is enough work so both TensorCores
    # on v7x get a share (no-op on v5e/v6e, which have a single TC).
    if pl.cdiv(BT, tile_bt) * pl.cdiv(SC, tile_sc) < 2:
        if BT >= 16:
            tile_bt = max(8, ((BT // 2) // 8) * 8)
        elif SC >= 256:
            tile_sc = max(128, ((SC // 2) // 128) * 128)
    return tile_bt, tile_sc


def alpha_blender_forward(x_spatial, x_temporal, image_only_indicator=None,
                          mix_factor=None, merge_strategy="learned_with_images",
                          tile_bt=None, tile_sc=None):
    """Pallas implementation of AlphaBlender.forward.

    x_spatial, x_temporal: (B*T, ...)   trailing dims are flattened to one lane axis
    image_only_indicator:  (B, T)       only used for 'learned_with_images'
    mix_factor:            (1,)         parameter / buffer
    """
    assert x_temporal.shape == x_spatial.shape
    orig_shape = x_spatial.shape
    BT = int(orig_shape[0])
    SC = int(np.prod(orig_shape[1:]))
    itemsize = np.dtype(x_spatial.dtype).itemsize

    xs2 = x_spatial.reshape(BT, SC)
    xt2 = x_temporal.reshape(BT, SC)

    # --- tile selection (no input padding: Pallas masks ragged last blocks) ----
    auto_bt, auto_sc = _choose_tiles(BT, SC, itemsize)
    tile_bt = auto_bt if tile_bt is None else min(int(tile_bt), BT)
    tile_sc = auto_sc if tile_sc is None else min(int(tile_sc), SC)
    if tile_bt < BT:                       # must be multiple of 8 unless full extent
        tile_bt = max(8, (tile_bt // 8) * 8)
    if tile_sc < SC:                       # must be multiple of 128 unless full extent
        tile_sc = max(128, (tile_sc // 128) * 128)

    grid = (pl.cdiv(BT, tile_bt), pl.cdiv(SC, tile_sc))

    tile_bytes = tile_bt * tile_sc * itemsize
    # 3 operands x 2 pipeline buffers + alpha stream + headroom; capped at v7x VMEM.
    vmem_limit = min(6 * tile_bytes + 4 * tile_bt * 4 + (4 << 20), 64 << 20)

    cost = pl.CostEstimate(flops=3 * BT * SC, transcendentals=0,
                           bytes_accessed=3 * BT * SC * itemsize + BT * 4)
    cparams = pltpu.CompilerParams(dimension_semantics=("parallel", "parallel"),
                                   vmem_limit_bytes=vmem_limit)

    x_spec = pl.BlockSpec((tile_bt, tile_sc), lambda i, j: (i, j))
    out_shape = jax.ShapeDtypeStruct((BT, SC), x_spatial.dtype)

    if merge_strategy in ("fixed", "learned"):
        a = mix_factor.astype(jnp.float32).reshape(())
        if merge_strategy == "learned":
            a = jax.nn.sigmoid(a)
        a_arr = a.reshape(1, 1)
        out2 = pl.pallas_call(
            _blend_scalar_alpha_kernel,
            out_shape=out_shape,
            grid=grid,
            in_specs=[
                pl.BlockSpec(memory_space=pltpu.MemorySpace.SMEM),  # scalar alpha
                x_spec,                                             # x_spatial
                x_spec,                                             # x_temporal
            ],
            out_specs=x_spec,
            compiler_params=cparams,
            cost_estimate=cost,
        )(a_arr, xs2, xt2)
    elif merge_strategy == "learned_with_images":
        assert image_only_indicator is not None, "need image_only_indicator"
        # Only the rearrange pattern 'b t -> (b t) 1 1' (x shaped (B*T, ...)) is
        # supported here.
        # TODO(synk): support the 5-D 'b t -> b 1 t 1 1' rearrange pattern.
        assert image_only_indicator.size == BT, \
            "image_only_indicator must have B*T entries ('b t -> (b t) 1 1')"
        sig = jax.nn.sigmoid(mix_factor.astype(jnp.float32).reshape(()))
        alpha_rows = jnp.where(image_only_indicator.reshape(-1).astype(bool),
                               jnp.float32(1.0), sig).reshape(BT, 1)
        out2 = pl.pallas_call(
            _blend_row_alpha_kernel,
            out_shape=out_shape,
            grid=grid,
            in_specs=[
                pl.BlockSpec((tile_bt, 1), lambda i, j: (i, 0)),    # per-row alpha
                x_spec,                                             # x_spatial
                x_spec,                                             # x_temporal
            ],
            out_specs=x_spec,
            compiler_params=cparams,
            cost_estimate=cost,
        )(alpha_rows, xs2, xt2)
    else:
        raise ValueError(f"unknown merge strategy {merge_strategy}")

    return out2.reshape(orig_shape)


if __name__ == "__main__":
    key = jax.random.PRNGKey(0)
    k1, k2, k3, k4, k5 = jax.random.split(key, 5)

    # --- case 1: learned_with_images, x: (B*T, S, C), auto tiles (grid splits BT) ---
    B, T, S, C = 2, 8, 16, 32
    BT = B * T
    x_spatial = jax.random.normal(k1, (BT, S, C), jnp.float32)
    x_temporal = jax.random.normal(k2, (BT, S, C), jnp.float32)
    image_only_indicator = (jax.random.uniform(k3, (B, T)) > 0.5).astype(jnp.float32)
    mix_factor = jnp.array([0.5], jnp.float32)   # AlphaBlender(alpha=0.5)

    out = alpha_blender_forward(x_spatial, x_temporal, image_only_indicator,
                                mix_factor, merge_strategy="learned_with_images")
    out = jax.block_until_ready(out)

    sig = jax.nn.sigmoid(mix_factor)[0]
    a_ref = jnp.where(image_only_indicator.astype(bool), 1.0, sig).reshape(BT, 1, 1)
    ref = (a_ref * x_spatial + (1.0 - a_ref) * x_temporal).astype(x_spatial.dtype)
    assert out.shape == ref.shape and out.dtype == ref.dtype
    assert jnp.allclose(out, ref, atol=1e-5, rtol=1e-5), \
        "mismatch vs reference (learned_with_images)"

    # --- case 2: 'learned' scalar alpha (SMEM path), ragged blocks on both axes ---
    xs_r = jax.random.normal(k4, (10, 320), jnp.float32)   # BT=10, SC=320
    xt_r = jax.random.normal(k5, (10, 320), jnp.float32)
    out2 = alpha_blender_forward(xs_r, xt_r, None, mix_factor,
                                 merge_strategy="learned", tile_bt=8, tile_sc=128)
    out2 = jax.block_until_ready(out2)
    ref2 = (sig * xs_r + (1.0 - sig) * xt_r).astype(xs_r.dtype)
    assert jnp.allclose(out2, ref2, atol=1e-5, rtol=1e-5), \
        "mismatch vs reference (learned, ragged blocks)"

    # --- case 3: 'fixed' strategy (raw mix_factor, no sigmoid) ---
    out3 = alpha_blender_forward(x_spatial, x_temporal, None, mix_factor,
                                 merge_strategy="fixed")
    out3 = jax.block_until_ready(out3)
    a_fixed = mix_factor[0]
    ref3 = (a_fixed * x_spatial + (1.0 - a_fixed) * x_temporal).astype(x_spatial.dtype)
    assert jnp.allclose(out3, ref3, atol=1e-5, rtol=1e-5), \
        "mismatch vs reference (fixed)"

    print("KERNEL_OK")
</pallas_src>

<mosaic_0001>
module attributes {stable_mosaic.version = 11 : i64} {
  func.func @_blend_row_alpha_kernel(%arg0: i32, %arg1: i32, %arg2: memref<8x1xf32, #tpu.memory_space<vmem>>, %arg3: memref<8x512xf32, #tpu.memory_space<vmem>>, %arg4: memref<8x512xf32, #tpu.memory_space<vmem>>, %arg5: memref<8x512xf32, #tpu.memory_space<vmem>>) attributes {dimension_semantics = [#tpu.dimension_semantics<parallel>, #tpu.dimension_semantics<parallel>], iteration_bounds = array<i64: 2, 1>, scalar_prefetch = 0 : i64, scratch_operands = 0 : i64, tpu.core_type = #tpu.core_type<tc>, window_params = [{transform_indices = @transform_0, window_bounds = array<i64: 8, 1>}, {transform_indices = @transform_1, window_bounds = array<i64: 8, 512>}, {transform_indices = @transform_2, window_bounds = array<i64: 8, 512>}, {transform_indices = @transform_3, window_bounds = array<i64: 8, 512>}]} {
    %c0 = arith.constant 0 : index
    %c0_0 = arith.constant 0 : index
    %0 = vector.load %arg2[%c0, %c0_0] : memref<8x1xf32, #tpu.memory_space<vmem>>, vector<8x1xf32>
    %c0_1 = arith.constant 0 : index
    %c0_2 = arith.constant 0 : index
    %1 = vector.load %arg3[%c0_1, %c0_2] : memref<8x512xf32, #tpu.memory_space<vmem>>, vector<8x512xf32>
    %c0_3 = arith.constant 0 : index
    %c0_4 = arith.constant 0 : index
    %2 = vector.load %arg4[%c0_3, %c0_4] : memref<8x512xf32, #tpu.memory_space<vmem>>, vector<8x512xf32>
    %3 = vector.broadcast %0 : vector<8x1xf32> to vector<8x512xf32>
    %4 = arith.mulf %3, %1 : vector<8x512xf32>
    %cst = arith.constant 1.000000e+00 : f32
    %5 = vector.broadcast %cst : f32 to vector<8x1xf32>
    %6 = arith.subf %5, %0 : vector<8x1xf32>
    %7 = vector.broadcast %6 : vector<8x1xf32> to vector<8x512xf32>
    %8 = arith.mulf %7, %2 : vector<8x512xf32>
    %9 = arith.addf %4, %8 : vector<8x512xf32>
    %c0_5 = arith.constant 0 : index
    %c0_6 = arith.constant 0 : index
    %10 = vector.load %arg5[%c0_5, %c0_6] : memref<8x512xf32, #tpu.memory_space<vmem>>, vector<8x512xf32>
    tpu.vector_store %arg5[%c0_5, %c0_6], %9 {strides = array<i32>} : memref<8x512xf32, #tpu.memory_space<vmem>>, vector<8x512xf32>,
    return
  }
  func.func @transform_0(%arg0: i32, %arg1: i32) -> (i32, i32) {
    %c0_i32 = arith.constant 0 : i32
    %c0_i32_0 = arith.constant 0 : i32
    return %arg0, %c0_i32 : i32, i32
  }
  func.func @transform_1(%arg0: i32, %arg1: i32) -> (i32, i32) {
    %c0_i32 = arith.constant 0 : i32
    return %arg0, %arg1 : i32, i32
  }
  func.func @transform_2(%arg0: i32, %arg1: i32) -> (i32, i32) {
    %c0_i32 = arith.constant 0 : i32
    return %arg0, %arg1 : i32, i32
  }
  func.func @transform_3(%arg0: i32, %arg1: i32) -> (i32, i32) {
    %c0_i32 = arith.constant 0 : i32
    return %arg0, %arg1 : i32, i32
  }
}

</mosaic_0001>

<llo_original>
// kernel: tpu_custom_call.1
$region0: #{tpu_custom_call.1}
  #allocation0 [shape = 'u32[]', space=smem, size = 0x4, offset = 0x4, fixed_abs, tag = 'smem constant byte address 0x4 - core index']
  #allocation1 [shape = 'u32[144,128]{1,0:T(1,128)}', space=vmem, size = 0x12000, scoped, tag = 'internal scratch']
  %s0 = inlined_call_operand.vmem [shape: f32[16,1], index: 0, kind: input, shape index: {}]
  %s1 = inlined_call_operand.hbm [shape: f32[16,512], index: 1, kind: input, shape index: {}]
  %s2 = inlined_call_operand.hbm [shape: f32[16,512], index: 2, kind: input, shape index: {}]
  %s3 = inlined_call_operand.hbm [shape: f32[16,512], index: 3, kind: output, shape index: {}]
  %s4 = sld [smem:[#allocation0]]
  $region53: #{tpu_custom_call.1} parent=0
    _
  %s6 = ssub.s32 1, %s4
  %s7 = scalar_select 0, %s6, %s4
  $region1: #{tpu_custom_call.1} parent=0
    #allocation2 [shape = 'u8[32768]{0}', space=vmem, size = 0x8000, scoped, tag = 'input window, operand 1']
    #allocation3 [shape = 's32[2]{0}', space=sflag, size = 0x8, scoped, tag = 'scoped memory for tpu_custom_call.1']
    #allocation4 [shape = 's32[2]{0}', space=sflag, size = 0x8, scoped, tag = 'scoped memory for tpu_custom_call.1']
    #allocation5 [shape = 'u8[32768]{0}', space=vmem, size = 0x8000, scoped, tag = 'input window, operand 2']
    #allocation6 [shape = 's32[2]{0}', space=sflag, size = 0x8, scoped, tag = 'scoped memory for tpu_custom_call.1']
    #allocation7 [shape = 'u8[32768]{0}', space=vmem, size = 0x8000, scoped, tag = 'output window, operand 0']
    %8 = vsyncpa [#allocation3], 0
    %s9 = scalar_lea.sflag [#allocation3], 1
    %10 = vsyncpa %s9, 0
    %11 = vsyncpa [#allocation6], 0
    %s12 = scalar_lea.sflag [#allocation6], 1
    %13 = vsyncpa %s12, 0
    %14 = vsyncpa [#allocation4], 0
    %s15 = scalar_lea.sflag [#allocation4], 1
    %16 = vsyncpa %s15, 0
    loop: start=0, step=1, limit=4
    $region2: #{tpu_custom_call.1} parent=1 // loop_pre_header
      _
    $region3: #{tpu_custom_call.1} parent=1 // loop_header
      %s18 = sphi 0, %s22
      %p19 = scmp.ge.s32.totalorder %s18, 4
      %s25 = sphi 0, %s37
      %s26 = sphi 0, %s33
      %s27 = sphi 0, %s25
      %s28 = sphi 0, %s26
      %s29 = sphi 0, %s27
      %s30 = sphi 0, %s28
      %s40 = sphi 0, %s42
      %s43 = sphi 0, %s40
      %s44 = sphi 0, %s43
      %s60 = sphi 0, %s44
      %s68 = sphi 0, %s70
      %s71 = sphi 0, %s68
      %s72 = sphi 0, %s71
      %s88 = sphi 0, %s72
      %s96 = sphi 0, %s98
      %s99 = sphi 0, %s96
      %s100 = sphi 0, %s99
      %s116 = sphi 0, %s100
      %s124 = sphi 0, %s126
      %s127 = sphi 0, %s124
      %s128 = sphi 0, %s127
      %s144 = sphi 0, %s128
    $region4: #{tpu_custom_call.1} parent=1 // loop_header_branch
      %21 = sbr.rel (%p19) target = $region8
    $region5: #{tpu_custom_call.1} parent=1 // loop_body
      %s23 = ssub.s32 %s18, 1
      %s24 = ssub.s32 %s18, 2
      %s31 = sadd.s32 1, %s26
      %p32 = scmp.ge.s32.totalorder %s31, 1
      %s33 = scalar_select %p32, 0, %s31
      %s34 = sadd.s32 1, %s25
      %s35 = scalar_select %p32, %s34, %s25
      %p36 = scmp.ge.s32.totalorder %s35, 2
      %s37 = scalar_select %p36, 0, %s35
      %s38 = ssub.s32 %s25, %s37
      %p39 = scmp.eq.s32.totalorder %s38, 0
      %s41 = sadd.s32 %s40, 1
      %s42 = scalar_select %p39, %s40, %s41
      %p45 = pneg %p39
      %p46 = scmp.eq.s32.totalorder %s18, 1
      %p47 = por %p45, %p46
      %p48 = scmp.ne.s32.totalorder %s40, %s43
      %p49 = scmp.eq.s32.totalorder %s18, 0
      %p50 = por %p48, %p49
      %p51 = scmp.ne.s32.totalorder %s40, %s43
      %p52 = scmp.eq.s32.totalorder %s23, 1
      %p53 = por %p51, %p52
      %p54 = scmp.ne.s32.totalorder %s43, %s44
      %p55 = scmp.eq.s32.totalorder %s23, 0
      %p56 = por %p54, %p55
      %p57 = scmp.ne.s32.totalorder %s43, %s44
      %p58 = scmp.eq.s32.totalorder %s24, 1
      %p59 = por %p57, %p58
      %p61 = scmp.ne.s32.totalorder %s44, %s60
      %p62 = scmp.eq.s32.totalorder %s24, 0
      %p63 = por %p61, %p62
      %s64 = ssub.s32 %s25, %s37
      %s65 = ssub.s32 %s26, %s33
      %s66 = sor.u32 %s64, %s65
      %p67 = scmp.eq.s32.totalorder %s66, 0
      %s69 = sadd.s32 %s68, 1
      %s70 = scalar_select %p67, %s68, %s69
      %p73 = pneg %p67
      %p74 = scmp.eq.s32.totalorder %s18, 1
      %p75 = por %p73, %p74
      %p76 = scmp.ne.s32.totalorder %s68, %s71
      %p77 = scmp.eq.s32.totalorder %s18, 0
      %p78 = por %p76, %p77
      %p79 = scmp.ne.s32.totalorder %s68, %s71
      %p80 = scmp.eq.s32.totalorder %s23, 1
      %p81 = por %p79, %p80
      %p82 = scmp.ne.s32.totalorder %s71, %s72
      %p83 = scmp.eq.s32.totalorder %s23, 0
      %p84 = por %p82, %p83
      %p85 = scmp.ne.s32.totalorder %s71, %s72
      %p86 = scmp.eq.s32.totalorder %s24, 1
      %p87 = por %p85, %p86
      %p89 = scmp.ne.s32.totalorder %s72, %s88
      %p90 = scmp.eq.s32.totalorder %s24, 0
      %p91 = por %p89, %p90
      %s92 = ssub.s32 %s25, %s37
      %s93 = ssub.s32 %s26, %s33
      %s94 = sor.u32 %s92, %s93
      %p95 = scmp.eq.s32.totalorder %s94, 0
      %s97 = sadd.s32 %s96, 1
      %s98 = scalar_select %p95, %s96, %s97
      %p101 = pneg %p95
      %p102 = scmp.eq.s32.totalorder %s18, 1
      %p103 = por %p101, %p102
      %p104 = scmp.ne.s32.totalorder %s96, %s99
      %p105 = scmp.eq.s32.totalorder %s18, 0
      %p106 = por %p104, %p105
      %p107 = scmp.ne.s32.totalorder %s96, %s99
      %p108 = scmp.eq.s32.totalorder %s23, 1
      %p109 = por %p107, %p108
      %p110 = scmp.ne.s32.totalorder %s99, %s100
      %p111 = scmp.eq.s32.totalorder %s23, 0
      %p112 = por %p110, %p111
      %p113 = scmp.ne.s32.totalorder %s99, %s100
      %p114 = scmp.eq.s32.totalorder %s24, 1
      %p115 = por %p113, %p114
      %p117 = scmp.ne.s32.totalorder %s100, %s116
      %p118 = scmp.eq.s32.totalorder %s24, 0
      %p119 = por %p117, %p118
      %s120 = ssub.s32 %s25, %s37
      %s121 = ssub.s32 %s26, %s33
      %s122 = sor.u32 %s120, %s121
      %p123 = scmp.eq.s32.totalorder %s122, 0
      %s125 = sadd.s32 %s124, 1
      %s126 = scalar_select %p123, %s124, %s125
      %p129 = pneg %p123
      %p130 = scmp.eq.s32.totalorder %s18, 1
      %p131 = por %p129, %p130
      %p132 = scmp.ne.s32.totalorder %s124, %s127
      %p133 = scmp.eq.s32.totalorder %s18, 0
      %p134 = por %p132, %p133
      %p135 = scmp.ne.s32.totalorder %s124, %s127
      %p136 = scmp.eq.s32.totalorder %s23, 1
      %p137 = por %p135, %p136
      %p138 = scmp.ne.s32.totalorder %s127, %s128
      %p139 = scmp.eq.s32.totalorder %s23, 0
      %p140 = por %p138, %p139
      %p141 = scmp.ne.s32.totalorder %s127, %s128
      %p142 = scmp.eq.s32.totalorder %s24, 1
      %p143 = por %p141, %p142
      %p145 = scmp.ne.s32.totalorder %s128, %s144
      %p146 = scmp.eq.s32.totalorder %s24, 0
      %p147 = por %p145, %p146
      %p148 = scmp.le.s32.totalorder 1, %s18
      %p149 = scmp.lt.s32.totalorder %s18, 3
      %p150 = pnand %p148, %p149
      %p151 = pneg %p150
      // Predicated region
      $region9: #{tpu_custom_call.1} parent=5 // pred_check
        _
      $region10: #{tpu_custom_call.1} parent=5 // pred_check_branch
        %153 = sbr.rel (%p150) target = $region12
      $region11: #{tpu_custom_call.1} parent=5 // pred_region
        %s154 = ssub.s32 %s18, 1
      $region12: #{tpu_custom_call.1} parent=5 // pred_fallthru
        _
      %p155 = scmp.lt.s32.totalorder %s18, 2
      // Predicated region
      $region13: #{tpu_custom_call.1} parent=5 // pred_check
        %p156 = pneg %p155
      $region14: #{tpu_custom_call.1} parent=5 // pred_check_branch
        %158 = sbr.rel (%p156) target = $region16
      $region15: #{tpu_custom_call.1} parent=5 // pred_region
        // Predicated region
        $region17: #{tpu_custom_call.1} parent=15 // pred_check
          %p159 = pneg %p50
        $region18: #{tpu_custom_call.1} parent=15 // pred_check_branch
          %161 = sbr.rel (%p159) target = $region20
        $region19: #{tpu_custom_call.1} parent=15 // pred_region
          %p162 = scmp.lt.s32.totalorder %s25, 1
          %s163 = scalar_select %p162, %s25, 1
          %s164 = smul.addr %s163, 8
          %s165 = scalar_lea.vmem %s0, %s164
        $region20: #{tpu_custom_call.1} parent=15 // pred_fallthru
          _
        // Predicated region
        $region21: #{tpu_custom_call.1} parent=15 // pred_check
          %p166 = pneg %p78
        $region22: #{tpu_custom_call.1} parent=15 // pred_check_branch
          %168 = sbr.rel (%p166) target = $region24
        $region23: #{tpu_custom_call.1} parent=15 // pred_region
          %s169 = sand.u32 %s68, 1
          %s170 = scalar_lea.sflag [#allocation3], %s169
          %s171 = sand.u32 %s68, 1
          %s172 = smul.addr %s171, 32
          %s173 = scalar_lea.vmem [#allocation2], %s172
          %s174 = smul.u32 4, %s26
          %s176 = ssub.s32 512, 512
          %177 = vsyncadd %s170, %s176
          %s178 = smul.addr %s25, 4
          %s179 = sadd.s32 %s174, %s178
          %s180 = smul.addr %s179, 128
          %s181 = scalar_lea.hbm %s1, %s180
          %s183 = sshll.u32 %s173, 4
          %s184 = int_to_ptr.vmem [resolvable:$true] %s183
          %186 = dma.hbm_to_vmem [thread:$0]  %s181, 512, %s184, %s170
        $region24: #{tpu_custom_call.1} parent=15 // pred_fallthru
          _
        // Predicated region
        $region25: #{tpu_custom_call.1} parent=15 // pred_check
          %p187 = pneg %p106
        $region26: #{tpu_custom_call.1} parent=15 // pred_check_branch
          %189 = sbr.rel (%p187) target = $region28
        $region27: #{tpu_custom_call.1} parent=15 // pred_region
          %s190 = sand.u32 %s96, 1
          %s191 = scalar_lea.sflag [#allocation6], %s190
          %s192 = sand.u32 %s96, 1
          %s193 = smul.addr %s192, 32
          %s194 = scalar_lea.vmem [#allocation5], %s193
          %s195 = smul.u32 4, %s26
          %s197 = ssub.s32 512, 512
          %198 = vsyncadd %s191, %s197
          %s199 = smul.addr %s25, 4
          %s200 = sadd.s32 %s195, %s199
          %s201 = smul.addr %s200, 128
          %s202 = scalar_lea.hbm %s2, %s201
          %s204 = sshll.u32 %s194, 4
          %s205 = int_to_ptr.vmem [resolvable:$true] %s204
          %207 = dma.hbm_to_vmem [thread:$0]  %s202, 512, %s205, %s191
        $region28: #{tpu_custom_call.1} parent=15 // pred_fallthru
          _
      $region16: #{tpu_custom_call.1} parent=5 // pred_fallthru
        _
      %p208 = scmp.le.s32.totalorder 1, %s18
      %p209 = scmp.lt.s32.totalorder %s18, 3
      %p210 = pnand %p208, %p209
      %p211 = pneg %p210
      // Predicated region
      $region29: #{tpu_custom_call.1} parent=5 // pred_check
        _
      $region30: #{tpu_custom_call.1} parent=5 // pred_check_branch
        %213 = sbr.rel (%p210) target = $region32
      $region31: #{tpu_custom_call.1} parent=5 // pred_region
        %s214 = ssub.s32 %s18, 1
        %s215 = sand.u32 %s71, 1
        %s216 = scalar_lea.sflag [#allocation3], %s215
        %s217 = sand.u32 %s71, 1
        %s218 = smul.addr %s217, 32
        %s219 = scalar_lea.vmem [#allocation2], %s218
        // Predicated region
        $region33: #{tpu_custom_call.1} parent=31 // pred_check
          %p220 = pneg %p84
        $region34: #{tpu_custom_call.1} parent=31 // pred_check_branch
          %222 = sbr.rel (%p220) target = $region36
        $region35: #{tpu_custom_call.1} parent=31 // pred_region
          %223 = dma.done %s216, 512
        $region36: #{tpu_custom_call.1} parent=31 // pred_fallthru
          _
        %s224 = sand.u32 %s99, 1
        %s225 = scalar_lea.sflag [#allocation6], %s224
        %s226 = sand.u32 %s99, 1
        %s227 = smul.addr %s226, 32
        %s228 = scalar_lea.vmem [#allocation5], %s227
        // Predicated region
        $region37: #{tpu_custom_call.1} parent=31 // pred_check
          %p229 = pneg %p112
        $region38: #{tpu_custom_call.1} parent=31 // pred_check_branch
          %231 = sbr.rel (%p229) target = $region40
        $region39: #{tpu_custom_call.1} parent=31 // pred_region
          %232 = dma.done %s225, 512
        $region40: #{tpu_custom_call.1} parent=31 // pred_fallthru
          _
        %p233 = scmp.lt.s32.totalorder %s27, 1
        %s234 = scalar_select %p233, %s27, 1
        %s235 = smul.addr %s234, 8
        %s236 = scalar_lea.vmem %s0, %s235
        %p237 = pneg %p56
        %p238 = pneg %p53
        %s239 = sand.u32 %s71, 1
        %s240 = scalar_lea.sflag [#allocation3], %s239
        %s241 = sand.u32 %s71, 1
        %s242 = smul.addr %s241, 32
        %s243 = scalar_lea.vmem [#allocation2], %s242
        %p244 = pneg %p84
        %p245 = pneg %p81
        %s246 = sand.u32 %s99, 1
        %s247 = scalar_lea.sflag [#allocation6], %s246
        %s248 = sand.u32 %s99, 1
        %s249 = smul.addr %s248, 32
        %s250 = scalar_lea.vmem [#allocation5], %s249
        %p251 = pneg %p112
        %p252 = pneg %p109
        %p253 = pneg %p140
        %p254 = pneg %p137
        %s255 = sand.u32 %s127, 1
        %s256 = scalar_lea.sflag [#allocation4], %s255
        %s257 = sand.u32 %s127, 1
        %s258 = smul.addr %s257, 32
        %s259 = scalar_lea.vmem [#allocation7], %s258
        %p260 = scmp.lt.s32.totalorder %s27, 1
        %s261 = scalar_select %p260, %s27, 1
        %s262 = smul.addr %s261, 8
        %s263 = scalar_lea.vmem %s0, %s262
        %s264 = smul.u32 4, %s28
        %s265 = smul.u32 4, %s28
        %s266 = smul.u32 4, %s28
        %v267 = vld [vmem:[%s263] sm:$0xff]
        %v268 = vld [vmem:[%s219] sm:$0xff]
        %v269 = vld [vmem:[%s219 + $0x8] sm:$0xff]
        %v270 = vld [vmem:[%s219 + $0x10] sm:$0xff]
        %v271 = vld [vmem:[%s219 + $0x18] sm:$0xff]
        %v272 = vld [vmem:[%s228] sm:$0xff]
        %v273 = vld [vmem:[%s228 + $0x8] sm:$0xff]
        %v274 = vld [vmem:[%s228 + $0x10] sm:$0xff]
        %v275 = vld [vmem:[%s228 + $0x18] sm:$0xff]
        %277 = vset.pattern.permute.xlu0 0
        %278 = vperm.xlu0 %277, %v267
        %v279 = vpop.permute.xlu0 %278
        %v281 = vmul.f32 %v279, %v268
        %v282 = vmul.f32 %v279, %v269
        %v283 = vmul.f32 %v279, %v270
        %v284 = vmul.f32 %v279, %v271
        %v285 = vsub.f32 1.0, %v267
        %287 = vset.pattern.permute.xlu0 0
        %288 = vperm.xlu0 %287, %v285
        %v289 = vpop.permute.xlu0 %288
        %v291 = vmul.f32 %v289, %v272
        %v292 = vmul.f32 %v289, %v273
        %v293 = vmul.f32 %v289, %v274
        %v294 = vmul.f32 %v289, %v275
        %v295 = vadd.f32 %v281, %v291
        %v296 = vadd.f32 %v282, %v292
        %v297 = vadd.f32 %v283, %v293
        %v298 = vadd.f32 %v284, %v294
        %299 = vst [vmem:[%s259] sm:$0xff] %v295
        %300 = vst [vmem:[%s259 + $0x8] sm:$0xff] %v296
        %301 = vst [vmem:[%s259 + $0x10] sm:$0xff] %v297
        %302 = vst [vmem:[%s259 + $0x18] sm:$0xff] %v298
        %s303 = sand.u32 %s127, 1
        %s304 = scalar_lea.sflag [#allocation4], %s303
        %s305 = sand.u32 %s127, 1
        %s306 = smul.addr %s305, 32
        %s307 = scalar_lea.vmem [#allocation7], %s306
        // Predicated region
        $region41: #{tpu_custom_call.1} parent=31 // pred_check
          %p308 = pneg %p137
        $region42: #{tpu_custom_call.1} parent=31 // pred_check_branch
          %310 = sbr.rel (%p308) target = $region44
        $region43: #{tpu_custom_call.1} parent=31 // pred_region
          %s311 = smul.u32 4, %s28
          %s313 = ssub.s32 512, 512
          %314 = vsyncadd %s304, %s313
          %s315 = smul.addr %s27, 4
          %s316 = sadd.s32 %s311, %s315
          %s317 = smul.addr %s316, 128
          %s318 = scalar_lea.hbm %s3, %s317
          %s320 = sshll.u32 %s307, 4
          %s321 = int_to_ptr.vmem [resolvable:$true] %s320
          %323 = dma.vmem_to_hbm [thread:$0]  %s321, 512, %s318, %s304
        $region44: #{tpu_custom_call.1} parent=31 // pred_fallthru
          _
      $region32: #{tpu_custom_call.1} parent=5 // pred_fallthru
        _
      %p324 = scmp.le.s32.totalorder 2, %s18
      // Predicated region
      $region45: #{tpu_custom_call.1} parent=5 // pred_check
        %p325 = pneg %p324
      $region46: #{tpu_custom_call.1} parent=5 // pred_check_branch
        %327 = sbr.rel (%p325) target = $region48
      $region47: #{tpu_custom_call.1} parent=5 // pred_region
        %s328 = ssub.s32 %s18, 2
        // Predicated region
        $region49: #{tpu_custom_call.1} parent=47 // pred_check
          %p329 = pneg %p143
        $region50: #{tpu_custom_call.1} parent=47 // pred_check_branch
          %331 = sbr.rel (%p329) target = $region52
        $region51: #{tpu_custom_call.1} parent=47 // pred_region
          %s332 = sand.u32 %s128, 1
          %s333 = scalar_lea.sflag [#allocation4], %s332
          %s334 = sand.u32 %s128, 1
          %s335 = smul.addr %s334, 32
          %s336 = scalar_lea.vmem [#allocation7], %s335
          %337 = dma.done %s333, 512
        $region52: #{tpu_custom_call.1} parent=47 // pred_fallthru
          _
      $region48: #{tpu_custom_call.1} parent=5 // pred_fallthru
        _
    $region6: #{tpu_custom_call.1} parent=1 // loop_footer
      %s22 = sadd.s32 1, %s18
    $region7: #{tpu_custom_call.1} parent=1 // loop_footer_branch
      %17 = sbr.rel target = $region3
    $region8: #{tpu_custom_call.1} parent=1 // loop_exit
      _
    %338 = vsyncpa [#allocation3], 1
    %s339 = scalar_lea.sflag [#allocation3], 1
    %340 = vsyncpa %s339, 1
    %341 = vsyncpa [#allocation6], 1
    %s342 = scalar_lea.sflag [#allocation6], 1
    %343 = vsyncpa %s342, 1
    %344 = vsyncpa [#allocation4], 1
    %s345 = scalar_lea.sflag [#allocation4], 1
    %346 = vsyncpa %s345, 1

</llo_original>
